<compile_context>
chip_gen: v5e
topology: v5e:2x2
jax: 0.10.0
libtpu: 0.0.40
codegen_flags: <defaults>
</compile_context>

<pallas_src>
import jax
import jax.numpy as jnp
from jax.experimental import pallas as pl
from jax.experimental.pallas import tpu as pltpu


def _leaky_relu(x, negative_slope=0.01):
    # Equivalent to torch.nn.functional.leaky_relu (default slope 0.01) for
    # slope in (0, 1): one VPU mul + one VPU max instead of cmp + select.
    return jnp.maximum(x, negative_slope * x)


def _round_up(x, m):
    return ((x + m - 1) // m) * m


def cnet_kernel(s_ref, a_ref,
                w1s_ref, w1a_ref, b1_ref,
                w2_ref, b2_ref,
                w3_ref, b3_ref,
                w4r_ref, b4c_ref,
                o_ref):
    """One batch tile of the whole critic MLP, fully fused.

    Layer 1 fuses torch.cat([s, a], 1) as two dots against the split W1.
    The final layer is computed directly as (O, TM) via a rhs-contracted
    dot_general so the output block is lane-dense (batch on lanes).
    """
    # TODO(synk): layer-1 could be merged into a single K=16 dot via an
    # in-kernel concat scratch; kept as two dots (MXU pads K anyway, diff is noise).
    h = (jnp.dot(s_ref[...], w1s_ref[...], preferred_element_type=jnp.float32)
         + jnp.dot(a_ref[...], w1a_ref[...], preferred_element_type=jnp.float32)
         + b1_ref[...])
    h = _leaky_relu(h)

    h = _leaky_relu(
        jnp.dot(h, w2_ref[...], preferred_element_type=jnp.float32) + b2_ref[...])
    h = _leaky_relu(
        jnp.dot(h, w3_ref[...], preferred_element_type=jnp.float32) + b3_ref[...])

    # (O, H2) x (TM, H2), contracting H2 on both -> (O, TM): batch ends up on
    # the 128-lane axis so the store and the HBM writeback are lane-dense.
    out_t = jax.lax.dot_general(
        w4r_ref[...], h,
        dimension_numbers=(((1,), (1,)), ((), ())),
        preferred_element_type=jnp.float32) + b4c_ref[...]
    o_ref[...] = out_t.astype(o_ref.dtype)


def prepare_cnet_params(params, state_dim):
    """One-time parameter prep (hoisted out of the per-call forward):
    f32 casts, first-layer weight split for the fused concat, and the output
    layer stored as rows (out_features, hidden_2) / column bias (out_features, 1)
    for the transposed final matmul."""
    f32 = jnp.float32
    w1 = params["w1"].astype(f32)
    return dict(
        w1s=w1[:state_dim],
        w1a=w1[state_dim:],
        b1=params["b1"].astype(f32).reshape(1, -1),
        w2=params["w2"].astype(f32),
        b2=params["b2"].astype(f32).reshape(1, -1),
        w3=params["w3"].astype(f32),
        b3=params["b3"].astype(f32).reshape(1, -1),
        w4r=params["w4"].astype(f32).T,               # (out_features, hidden_2)
        b4c=params["b4"].astype(f32).reshape(-1, 1),  # (out_features, 1)
    )


def _pick_batch_tile(B, cap=2048):
    # Lane-dense output blocks need TM % 128 == 0; big tiles amortize the
    # ~0.35 us per-grid-step pipeline overhead (working set is tiny: at
    # TM=2048 it is well under 1 MiB, no vmem_limit override needed anywhere).
    TM = min(cap, _round_up(B, 128))
    # Keep >= 2 grid steps when the batch is big enough so the "parallel"
    # batch axis can shard across both TensorCores on v7x (costs at most one
    # extra tiny grid step on single-TC v5e/v6e).
    if B > 128:
        TM = min(TM, _round_up(int(pl.cdiv(B, 2)), 128))
    return TM


@jax.jit
def cnet_forward(s, a, prepped):
    B, state_dim = s.shape
    action_dim = a.shape[1]
    hidden_1 = prepped["w1s"].shape[1]
    hidden_2 = prepped["w2"].shape[1]
    out_features = prepped["w4r"].shape[0]

    f32 = jnp.float32
    s = s.astype(f32)
    a = a.astype(f32)

    TM = _pick_batch_tile(B)
    num_blocks = int(pl.cdiv(B, TM))
    # Only the (tiny) output is allocated rounded-up, so every output block
    # write is a full unmasked block; inputs are NOT padded/copied — Pallas
    # clamps the boundary block's reads (garbage rows land in padded output
    # columns which are sliced off below).
    B_pad = num_blocks * TM

    batch_map = lambda i: (i, 0)   # batch-tiled inputs follow the grid
    const_map = lambda i: (0, 0)   # weights/biases stay resident in VMEM
    out_map = lambda i: (0, i)     # transposed output: batch on the lane axis

    in_specs = [
        pl.BlockSpec((TM, state_dim), batch_map),          # s
        pl.BlockSpec((TM, action_dim), batch_map),         # a
        pl.BlockSpec((state_dim, hidden_1), const_map),    # w1_s
        pl.BlockSpec((action_dim, hidden_1), const_map),   # w1_a
        pl.BlockSpec((1, hidden_1), const_map),            # b1
        pl.BlockSpec((hidden_1, hidden_2), const_map),     # w2
        pl.BlockSpec((1, hidden_2), const_map),            # b2
        pl.BlockSpec((hidden_2, hidden_2), const_map),     # w3
        pl.BlockSpec((1, hidden_2), const_map),            # b3
        pl.BlockSpec((out_features, hidden_2), const_map), # w4 rows
        pl.BlockSpec((out_features, 1), const_map),        # b4 column
    ]
    out_spec = pl.BlockSpec((out_features, TM), out_map)

    out_t = pl.pallas_call(
        cnet_kernel,
        out_shape=jax.ShapeDtypeStruct((out_features, B_pad), f32),
        grid=(num_blocks,),
        in_specs=in_specs,
        out_specs=out_spec,
        compiler_params=pltpu.CompilerParams(
            dimension_semantics=("parallel",)),
    )(s, a,
      prepped["w1s"], prepped["w1a"], prepped["b1"],
      prepped["w2"], prepped["b2"],
      prepped["w3"], prepped["b3"],
      prepped["w4r"], prepped["b4c"])

    # (O, B_pad) -> drop lane padding -> (B, O).
    return out_t[:, :B].T


def init_cnet_params(key, in_features, out_features, hidden_1=64, hidden_2=32):
    """Synthetic init mirroring the PyTorch module:
    weights ~ N(0, 0.1); biases ~ U(-1/sqrt(fan_in), 1/sqrt(fan_in))."""
    keys = jax.random.split(key, 8)

    def linear(kw, kb, fan_in, fan_out):
        w = 0.1 * jax.random.normal(kw, (fan_in, fan_out), dtype=jnp.float32)
        bound = 1.0 / jnp.sqrt(jnp.float32(fan_in))
        b = jax.random.uniform(kb, (1, fan_out), dtype=jnp.float32,
                               minval=-bound, maxval=bound)
        return w, b

    w1, b1 = linear(keys[0], keys[1], in_features, hidden_1)
    w2, b2 = linear(keys[2], keys[3], hidden_1, hidden_2)
    w3, b3 = linear(keys[4], keys[5], hidden_2, hidden_2)
    w4, b4 = linear(keys[6], keys[7], hidden_2, out_features)
    return dict(w1=w1, b1=b1, w2=w2, b2=b2, w3=w3, b3=b3, w4=w4, b4=b4)


def _reference(s, a, p):
    x = jnp.concatenate([s, a], axis=1)
    h = _leaky_relu(x @ p["w1"] + p["b1"])
    h = _leaky_relu(h @ p["w2"] + p["b2"])
    h = _leaky_relu(h @ p["w3"] + p["b3"])
    return h @ p["w4"] + p["b4"]


if __name__ == "__main__":
    # Small DDPG-critic-like shapes: state_dim=12, action_dim=4, batch=8.
    state_dim, action_dim = 12, 4
    in_features = state_dim + action_dim
    out_features = 1
    hidden_1, hidden_2 = 64, 32

    key = jax.random.PRNGKey(0)
    k_s, k_a, k_p, k_s2, k_a2 = jax.random.split(key, 5)

    params = init_cnet_params(k_p, in_features, out_features, hidden_1, hidden_2)
    prepped = prepare_cnet_params(params, state_dim)   # one-time prep

    # Primary small test (single grid step, block larger than batch).
    batch = 8
    s = jax.random.normal(k_s, (batch, state_dim), dtype=jnp.float32)
    a = jax.random.normal(k_a, (batch, action_dim), dtype=jnp.float32)
    out = cnet_forward(s, a, prepped)
    jax.block_until_ready(out)
    ref = _reference(s, a, params)
    assert out.shape == (batch, out_features), out.shape
    assert jnp.allclose(out, ref, atol=1e-4, rtol=1e-4), float(
        jnp.max(jnp.abs(out - ref)))

    # Second test: non-divisible batch exercising multi-step grid + boundary masking.
    batch2 = 200
    s2 = jax.random.normal(k_s2, (batch2, state_dim), dtype=jnp.float32)
    a2 = jax.random.normal(k_a2, (batch2, action_dim), dtype=jnp.float32)
    out2 = cnet_forward(s2, a2, prepped)
    jax.block_until_ready(out2)
    ref2 = _reference(s2, a2, params)
    assert out2.shape == (batch2, out_features), out2.shape
    assert jnp.allclose(out2, ref2, atol=1e-4, rtol=1e-4), float(
        jnp.max(jnp.abs(out2 - ref2)))

    print("KERNEL_OK")
</pallas_src>

<mosaic_0001>
module attributes {stable_mosaic.version = 11 : i64} {
  func.func @cnet_kernel(%arg0: i32, %arg1: memref<128x12xf32, #tpu.memory_space<vmem>>, %arg2: memref<128x4xf32, #tpu.memory_space<vmem>>, %arg3: memref<12x64xf32, #tpu.memory_space<vmem>>, %arg4: memref<4x64xf32, #tpu.memory_space<vmem>>, %arg5: memref<1x64xf32, #tpu.memory_space<vmem>>, %arg6: memref<64x32xf32, #tpu.memory_space<vmem>>, %arg7: memref<1x32xf32, #tpu.memory_space<vmem>>, %arg8: memref<32x32xf32, #tpu.memory_space<vmem>>, %arg9: memref<1x32xf32, #tpu.memory_space<vmem>>, %arg10: memref<1x32xf32, #tpu.memory_space<vmem>>, %arg11: memref<1x1xf32, #tpu.memory_space<vmem>>, %arg12: memref<1x128xf32, #tpu.memory_space<vmem>>) attributes {dimension_semantics = [#tpu.dimension_semantics<parallel>], iteration_bounds = array<i64: 1>, scalar_prefetch = 0 : i64, scratch_operands = 0 : i64, tpu.core_type = #tpu.core_type<tc>, window_params = [{transform_indices = @transform_0, window_bounds = array<i64: 128, 12>}, {transform_indices = @transform_1, window_bounds = array<i64: 128, 4>}, {pipeline_mode = #tpu.pipeline_mode<synchronous>, transform_indices = @transform_2, window_bounds = array<i64: 12, 64>}, {pipeline_mode = #tpu.pipeline_mode<synchronous>, transform_indices = @transform_3, window_bounds = array<i64: 4, 64>}, {pipeline_mode = #tpu.pipeline_mode<synchronous>, transform_indices = @transform_4, window_bounds = array<i64: 1, 64>}, {pipeline_mode = #tpu.pipeline_mode<synchronous>, transform_indices = @transform_5, window_bounds = array<i64: 64, 32>}, {pipeline_mode = #tpu.pipeline_mode<synchronous>, transform_indices = @transform_6, window_bounds = array<i64: 1, 32>}, {pipeline_mode = #tpu.pipeline_mode<synchronous>, transform_indices = @transform_7, window_bounds = array<i64: 32, 32>}, {pipeline_mode = #tpu.pipeline_mode<synchronous>, transform_indices = @transform_8, window_bounds = array<i64: 1, 32>}, {pipeline_mode = #tpu.pipeline_mode<synchronous>, transform_indices = @transform_9, window_bounds = array<i64: 1, 32>}, {pipeline_mode = #tpu.pipeline_mode<synchronous>, transform_indices = @transform_10, window_bounds = array<i64: 1, 1>}, {transform_indices = @transform_11, window_bounds = array<i64: 1, 128>}]} {
    %c0 = arith.constant 0 : index
    %c0_0 = arith.constant 0 : index
    %0 = vector.load %arg1[%c0, %c0_0] : memref<128x12xf32, #tpu.memory_space<vmem>>, vector<128x12xf32>
    %c0_1 = arith.constant 0 : index
    %c0_2 = arith.constant 0 : index
    %1 = vector.load %arg3[%c0_1, %c0_2] : memref<12x64xf32, #tpu.memory_space<vmem>>, vector<12x64xf32>
    %cst = arith.constant dense<0.000000e+00> : vector<128x64xf32>
    %2 = tpu.matmul %0, %1, %cst {dimension_numbers = #tpu.dot_dimension_numbers<[1], [0], [0], [1], [0, 0, 1, 1], [], []>} : vector<128x12xf32>, vector<12x64xf32>, vector<128x64xf32> -> vector<128x64xf32>
    %c0_3 = arith.constant 0 : index
    %c0_4 = arith.constant 0 : index
    %3 = vector.load %arg2[%c0_3, %c0_4] : memref<128x4xf32, #tpu.memory_space<vmem>>, vector<128x4xf32>
    %c0_5 = arith.constant 0 : index
    %c0_6 = arith.constant 0 : index
    %4 = vector.load %arg4[%c0_5, %c0_6] : memref<4x64xf32, #tpu.memory_space<vmem>>, vector<4x64xf32>
    %cst_7 = arith.constant dense<0.000000e+00> : vector<128x64xf32>
    %5 = tpu.matmul %3, %4, %cst_7 {dimension_numbers = #tpu.dot_dimension_numbers<[1], [0], [0], [1], [0, 0, 1, 1], [], []>} : vector<128x4xf32>, vector<4x64xf32>, vector<128x64xf32> -> vector<128x64xf32>
    %6 = arith.addf %2, %5 : vector<128x64xf32>
    %c0_8 = arith.constant 0 : index
    %c0_9 = arith.constant 0 : index
    %7 = vector.load %arg5[%c0_8, %c0_9] : memref<1x64xf32, #tpu.memory_space<vmem>>, vector<1x64xf32>
    %8 = vector.broadcast %7 : vector<1x64xf32> to vector<128x64xf32>
    %9 = arith.addf %6, %8 : vector<128x64xf32>
    %cst_10 = arith.constant 0.00999999977 : f32
    %10 = vector.broadcast %cst_10 : f32 to vector<128x64xf32>
    %11 = arith.mulf %10, %9 : vector<128x64xf32>
    %12 = arith.maximumf %9, %11 : vector<128x64xf32>
    %c0_11 = arith.constant 0 : index
    %c0_12 = arith.constant 0 : index
    %13 = vector.load %arg6[%c0_11, %c0_12] : memref<64x32xf32, #tpu.memory_space<vmem>>, vector<64x32xf32>
    %cst_13 = arith.constant dense<0.000000e+00> : vector<128x32xf32>
    %14 = tpu.matmul %12, %13, %cst_13 {dimension_numbers = #tpu.dot_dimension_numbers<[1], [0], [0], [1], [0, 0, 1, 1], [], []>} : vector<128x64xf32>, vector<64x32xf32>, vector<128x32xf32> -> vector<128x32xf32>
    %c0_14 = arith.constant 0 : index
    %c0_15 = arith.constant 0 : index
    %15 = vector.load %arg7[%c0_14, %c0_15] : memref<1x32xf32, #tpu.memory_space<vmem>>, vector<1x32xf32>
    %16 = vector.broadcast %15 : vector<1x32xf32> to vector<128x32xf32>
    %17 = arith.addf %14, %16 : vector<128x32xf32>
    %cst_16 = arith.constant 0.00999999977 : f32
    %18 = vector.broadcast %cst_16 : f32 to vector<128x32xf32>
    %19 = arith.mulf %18, %17 : vector<128x32xf32>
    %20 = arith.maximumf %17, %19 : vector<128x32xf32>
    %c0_17 = arith.constant 0 : index
    %c0_18 = arith.constant 0 : index
    %21 = vector.load %arg8[%c0_17, %c0_18] : memref<32x32xf32, #tpu.memory_space<vmem>>, vector<32x32xf32>
    %cst_19 = arith.constant dense<0.000000e+00> : vector<128x32xf32>
    %22 = tpu.matmul %20, %21, %cst_19 {dimension_numbers = #tpu.dot_dimension_numbers<[1], [0], [0], [1], [0, 0, 1, 1], [], []>} : vector<128x32xf32>, vector<32x32xf32>, vector<128x32xf32> -> vector<128x32xf32>
    %c0_20 = arith.constant 0 : index
    %c0_21 = arith.constant 0 : index
    %23 = vector.load %arg9[%c0_20, %c0_21] : memref<1x32xf32, #tpu.memory_space<vmem>>, vector<1x32xf32>
    %24 = vector.broadcast %23 : vector<1x32xf32> to vector<128x32xf32>
    %25 = arith.addf %22, %24 : vector<128x32xf32>
    %cst_22 = arith.constant 0.00999999977 : f32
    %26 = vector.broadcast %cst_22 : f32 to vector<128x32xf32>
    %27 = arith.mulf %26, %25 : vector<128x32xf32>
    %28 = arith.maximumf %25, %27 : vector<128x32xf32>
    %c0_23 = arith.constant 0 : index
    %c0_24 = arith.constant 0 : index
    %29 = vector.load %arg10[%c0_23, %c0_24] : memref<1x32xf32, #tpu.memory_space<vmem>>, vector<1x32xf32>
    %cst_25 = arith.constant dense<0.000000e+00> : vector<1x128xf32>
    %30 = tpu.matmul %29, %28, %cst_25 {dimension_numbers = #tpu.dot_dimension_numbers<[1], [1], [0], [0], [0, 0, 1, 0], [], []>} : vector<1x32xf32>, vector<128x32xf32>, vector<1x128xf32> -> vector<1x128xf32>
    %c0_26 = arith.constant 0 : index
    %c0_27 = arith.constant 0 : index
    %31 = vector.load %arg11[%c0_26, %c0_27] : memref<1x1xf32, #tpu.memory_space<vmem>>, vector<1x1xf32>
    %32 = vector.broadcast %31 : vector<1x1xf32> to vector<1x128xf32>
    %33 = arith.addf %30, %32 : vector<1x128xf32>
    %c0_28 = arith.constant 0 : index
    %c0_29 = arith.constant 0 : index
    %34 = vector.load %arg12[%c0_28, %c0_29] : memref<1x128xf32, #tpu.memory_space<vmem>>, vector<1x128xf32>
    tpu.vector_store %arg12[%c0_28, %c0_29], %33 {strides = array<i32>} : memref<1x128xf32, #tpu.memory_space<vmem>>, vector<1x128xf32>,
    return
  }
  func.func @transform_0(%arg0: i32) -> (i32, i32) {
    %c0_i32 = arith.constant 0 : i32
    %c0_i32_0 = arith.constant 0 : i32
    return %arg0, %c0_i32 : i32, i32
  }
  func.func @transform_1(%arg0: i32) -> (i32, i32) {
    %c0_i32 = arith.constant 0 : i32
    %c0_i32_0 = arith.constant 0 : i32
    return %arg0, %c0_i32 : i32, i32
  }
  func.func @transform_2(%arg0: i32) -> (i32, i32) {
    %c0_i32 = arith.constant 0 : i32
    %c0_i32_0 = arith.constant 0 : i32
    %c0_i32_1 = arith.constant 0 : i32
    return %c0_i32, %c0_i32_0 : i32, i32
  }
  func.func @transform_3(%arg0: i32) -> (i32, i32) {
    %c0_i32 = arith.constant 0 : i32
    %c0_i32_0 = arith.constant 0 : i32
    %c0_i32_1 = arith.constant 0 : i32
    return %c0_i32, %c0_i32_0 : i32, i32
  }
  func.func @transform_4(%arg0: i32) -> (i32, i32) {
    %c0_i32 = arith.constant 0 : i32
    %c0_i32_0 = arith.constant 0 : i32
    %c0_i32_1 = arith.constant 0 : i32
    return %c0_i32, %c0_i32_0 : i32, i32
  }
  func.func @transform_5(%arg0: i32) -> (i32, i32) {
    %c0_i32 = arith.constant 0 : i32
    %c0_i32_0 = arith.constant 0 : i32
    %c0_i32_1 = arith.constant 0 : i32
    return %c0_i32, %c0_i32_0 : i32, i32
  }
  func.func @transform_6(%arg0: i32) -> (i32, i32) {
    %c0_i32 = arith.constant 0 : i32
    %c0_i32_0 = arith.constant 0 : i32
    %c0_i32_1 = arith.constant 0 : i32
    return %c0_i32, %c0_i32_0 : i32, i32
  }
  func.func @transform_7(%arg0: i32) -> (i32, i32) {
    %c0_i32 = arith.constant 0 : i32
    %c0_i32_0 = arith.constant 0 : i32
    %c0_i32_1 = arith.constant 0 : i32
    return %c0_i32, %c0_i32_0 : i32, i32
  }
  func.func @transform_8(%arg0: i32) -> (i32, i32) {
    %c0_i32 = arith.constant 0 : i32
    %c0_i32_0 = arith.constant 0 : i32
    %c0_i32_1 = arith.constant 0 : i32
    return %c0_i32, %c0_i32_0 : i32, i32
  }
  func.func @transform_9(%arg0: i32) -> (i32, i32) {
    %c0_i32 = arith.constant 0 : i32
    %c0_i32_0 = arith.constant 0 : i32
    %c0_i32_1 = arith.constant 0 : i32
    return %c0_i32, %c0_i32_0 : i32, i32
  }
  func.func @transform_10(%arg0: i32) -> (i32, i32) {
    %c0_i32 = arith.constant 0 : i32
    %c0_i32_0 = arith.constant 0 : i32
    %c0_i32_1 = arith.constant 0 : i32
    return %c0_i32, %c0_i32_0 : i32, i32
  }
  func.func @transform_11(%arg0: i32) -> (i32, i32) {
    %c0_i32 = arith.constant 0 : i32
    %c0_i32_0 = arith.constant 0 : i32
    return %c0_i32, %arg0 : i32, i32
  }
}

</mosaic_0001>

<llo_original>
// kernel: cnet_forward.1
$region0: #{cnet_forward.1}
  #allocation0 [shape = 'u32[]', space=smem, size = 0x4, offset = 0x4, fixed_abs, tag = 'smem constant byte address 0x4 - core index']
  #allocation1 [shape = 'u32[72,128]{1,0:T(1,128)}', space=vmem, size = 0x9000, scoped, tag = 'internal scratch']
  #allocation2 [shape = 'f32[1,1]{1,0:T(1,128)S(1)}', space=vmem, size = 0x200, scoped, tag = 'scoped memory for cnet_forward.1']
  %s0 = inlined_call_operand.vmem [shape: f32[8,12], index: 0, kind: input, shape index: {}]
  %s1 = inlined_call_operand.vmem [shape: f32[8,4], index: 1, kind: input, shape index: {}]
  %s2 = inlined_call_operand.vmem [shape: f32[12,64], index: 2, kind: input, shape index: {}]
  %s3 = inlined_call_operand.vmem [shape: f32[4,64], index: 3, kind: input, shape index: {}]
  %s4 = inlined_call_operand.vmem [shape: f32[1,64], index: 4, kind: input, shape index: {}]
  %s5 = inlined_call_operand.vmem [shape: f32[64,32], index: 5, kind: input, shape index: {}]
  %s6 = inlined_call_operand.vmem [shape: f32[1,32], index: 6, kind: input, shape index: {}]
  %s7 = inlined_call_operand.vmem [shape: f32[32,32], index: 7, kind: input, shape index: {}]
  %s8 = inlined_call_operand.vmem [shape: f32[1,32], index: 8, kind: input, shape index: {}]
  %s9 = inlined_call_operand.vmem [shape: f32[1,32], index: 9, kind: input, shape index: {}]
  %s10 = inlined_call_operand.<no memory space> [shape: f32[1,1], index: 10, kind: input, shape index: {}]
  %s11 = inlined_call_operand.vmem [shape: f32[1,128], index: 11, kind: output, shape index: {}]
  %s12 = sld [smem:[#allocation0]]
  $region54: #{cnet_forward.1} parent=0
    _
  %s14 = ssub.s32 1, %s12
  %s15 = scalar_select 0, %s14, %s12
  %v16 = vstv %s10
  %17 = vst [vmem:[#allocation2] sm:$0x1] %v16
  // Predicated region
  $region2: #{cnet_forward.1} parent=0 // pred_check
    _
  $region3: #{cnet_forward.1} parent=0 // pred_check_branch
    %19 = sbr.rel (0) target = $region5
  $region4: #{cnet_forward.1} parent=0 // pred_region
    _
  $region5: #{cnet_forward.1} parent=0 // pred_fallthru
    _
  // Predicated region
  $region6: #{cnet_forward.1} parent=0 // pred_check
    _
  $region7: #{cnet_forward.1} parent=0 // pred_check_branch
    %21 = sbr.rel (0) target = $region9
  $region8: #{cnet_forward.1} parent=0 // pred_region
    _
  $region9: #{cnet_forward.1} parent=0 // pred_fallthru
    _
  // Predicated region
  $region10: #{cnet_forward.1} parent=0 // pred_check
    _
  $region11: #{cnet_forward.1} parent=0 // pred_check_branch
    %23 = sbr.rel (0) target = $region13
  $region12: #{cnet_forward.1} parent=0 // pred_region
    _
  $region13: #{cnet_forward.1} parent=0 // pred_fallthru
    _
  // Predicated region
  $region14: #{cnet_forward.1} parent=0 // pred_check
    _
  $region15: #{cnet_forward.1} parent=0 // pred_check_branch
    %25 = sbr.rel (0) target = $region17
  $region16: #{cnet_forward.1} parent=0 // pred_region
    _
  $region17: #{cnet_forward.1} parent=0 // pred_fallthru
    _
  // Predicated region
  $region18: #{cnet_forward.1} parent=0 // pred_check
    _
  $region19: #{cnet_forward.1} parent=0 // pred_check_branch
    %27 = sbr.rel (0) target = $region21
  $region20: #{cnet_forward.1} parent=0 // pred_region
    _
  $region21: #{cnet_forward.1} parent=0 // pred_fallthru
    _
  // Predicated region
  $region22: #{cnet_forward.1} parent=0 // pred_check
    _
  $region23: #{cnet_forward.1} parent=0 // pred_check_branch
    %29 = sbr.rel (0) target = $region25
  $region24: #{cnet_forward.1} parent=0 // pred_region
    _
  $region25: #{cnet_forward.1} parent=0 // pred_fallthru
    _
  // Predicated region
  $region26: #{cnet_forward.1} parent=0 // pred_check
    _
  $region27: #{cnet_forward.1} parent=0 // pred_check_branch
    %31 = sbr.rel (0) target = $region29
  $region28: #{cnet_forward.1} parent=0 // pred_region
    _
  $region29: #{cnet_forward.1} parent=0 // pred_fallthru
    _
  // Predicated region
  $region30: #{cnet_forward.1} parent=0 // pred_check
    _
  $region31: #{cnet_forward.1} parent=0 // pred_check_branch
    %33 = sbr.rel (0) target = $region33
  $region32: #{cnet_forward.1} parent=0 // pred_region
    _
  $region33: #{cnet_forward.1} parent=0 // pred_fallthru
    _
  // Predicated region
  $region34: #{cnet_forward.1} parent=0 // pred_check
    _
  $region35: #{cnet_forward.1} parent=0 // pred_check_branch
    %35 = sbr.rel (0) target = $region37
  $region36: #{cnet_forward.1} parent=0 // pred_region
    _
  $region37: #{cnet_forward.1} parent=0 // pred_fallthru
    _
  // Predicated region
  $region38: #{cnet_forward.1} parent=0 // pred_check
    _
  $region39: #{cnet_forward.1} parent=0 // pred_check_branch
    %37 = sbr.rel (0) target = $region41
  $region40: #{cnet_forward.1} parent=0 // pred_region
    _
  $region41: #{cnet_forward.1} parent=0 // pred_fallthru
    _
  // Predicated region
  $region42: #{cnet_forward.1} parent=0 // pred_check
    _
  $region43: #{cnet_forward.1} parent=0 // pred_check_branch
    %39 = sbr.rel (0) target = $region45
  $region44: #{cnet_forward.1} parent=0 // pred_region
    _
  $region45: #{cnet_forward.1} parent=0 // pred_fallthru
    _
  %v40 = vld [vmem:[%s0] sm:$0xff]
  %v41 = vld [vmem:[%s0 + $0x8] sm:$0xff]
  %v42 = vld [vmem:[%s0 + $0x10] sm:$0xff]
  %v43 = vld [vmem:[%s0 + $0x18] sm:$0xff]
  %v44 = vld [vmem:[%s0 + $0x20] sm:$0xff]
  %v45 = vld [vmem:[%s0 + $0x28] sm:$0xff]
  %v46 = vld [vmem:[%s0 + $0x30] sm:$0xff]
  %v47 = vld [vmem:[%s0 + $0x38] sm:$0xff]
  %v48 = vld [vmem:[%s0 + $0x40] sm:$0xff]
  %v49 = vld [vmem:[%s0 + $0x48] sm:$0xff]
  %v50 = vld [vmem:[%s0 + $0x50] sm:$0xff]
  %v51 = vld [vmem:[%s0 + $0x58] sm:$0xff]
  %v52 = vld [vmem:[%s0 + $0x60] sm:$0xff]
  %v53 = vld [vmem:[%s0 + $0x68] sm:$0xff]
  %v54 = vld [vmem:[%s0 + $0x70] sm:$0xff]
  %v55 = vld [vmem:[%s0 + $0x78] sm:$0xff]
  %v56 = vld [vmem:[%s2] sm:$0xff]
  %v57 = vld [vmem:[%s2 + $0x8] sm:$0xf]
  %v58 = vld [vmem:[%s1] sm:$0xff]
  %v59 = vld [vmem:[%s1 + $0x8] sm:$0xff]
  %v60 = vld [vmem:[%s1 + $0x10] sm:$0xff]
  %v61 = vld [vmem:[%s1 + $0x18] sm:$0xff]
  %v62 = vld [vmem:[%s1 + $0x20] sm:$0xff]
  %v63 = vld [vmem:[%s1 + $0x28] sm:$0xff]
  %v64 = vld [vmem:[%s1 + $0x30] sm:$0xff]
  %v65 = vld [vmem:[%s1 + $0x38] sm:$0xff]
  %v66 = vld [vmem:[%s1 + $0x40] sm:$0xff]
  %v67 = vld [vmem:[%s1 + $0x48] sm:$0xff]
  %v68 = vld [vmem:[%s1 + $0x50] sm:$0xff]
  %v69 = vld [vmem:[%s1 + $0x58] sm:$0xff]
  %v70 = vld [vmem:[%s1 + $0x60] sm:$0xff]
  %v71 = vld [vmem:[%s1 + $0x68] sm:$0xff]
  %v72 = vld [vmem:[%s1 + $0x70] sm:$0xff]
  %v73 = vld [vmem:[%s1 + $0x78] sm:$0xff]
  %v74 = vld [vmem:[%s3] sm:$0xf]
  %vm75 = vcmask 31744
  %v77 = vsel %vm75, %v58, 0
  %v80 = vsel %vm75, %v59, 0
  %v83 = vsel %vm75, %v60, 0
  %v86 = vsel %vm75, %v61, 0
  %v89 = vsel %vm75, %v62, 0
  %v92 = vsel %vm75, %v63, 0
  %v95 = vsel %vm75, %v64, 0
  %v98 = vsel %vm75, %v65, 0
  %v101 = vsel %vm75, %v66, 0
  %v104 = vsel %vm75, %v67, 0
  %v107 = vsel %vm75, %v68, 0
  %v110 = vsel %vm75, %v69, 0
  %v113 = vsel %vm75, %v70, 0
  %v116 = vsel %vm75, %v71, 0
  %v119 = vsel %vm75, %v72, 0
  %v122 = vsel %vm75, %v73, 0
  %vm124 = vcmask 1043456
  %v126 = vsel %vm124, %v74, 0
  %128 = vmatpush.msra.mxu0 0.0
  %129 = vmatpush.msra.mxu0 0.0
  %130 = vmatpush.msra.mxu0 0.0
  %131 = vmatpush.msra.mxu0 0.0
  %132 = vmatpush.msra.mxu0 0.0
  %133 = vmatpush.msra.mxu0 0.0
  %134 = vmatpush.msra.mxu0 0.0
  %135 = vmatpush.msra.mxu0 0.0
  %136 = vmatpush.msra.mxu0 0.0
  %137 = vmatpush.msra.mxu0 0.0
  %138 = vmatpush.msra.mxu0 0.0
  %139 = vmatpush.msra.mxu0 0.0
  %140 = vmatpush.msra.mxu0 0.0
  %141 = vmatpush.msra.mxu0 0.0
  %142 = vmatpush.msra.mxu0 0.0
  %143 = vmatpush.msra.mxu0 %v126
  %144 = vmatmul.f32.gmra.mxu0 %v77
  %v145 = vpop.f32.mrf.mxu0
  %v146 = vadd.f32 0.0, %v145
  %147 = vmatmul.f32.gmra.mxu0 %v80
  %v148 = vpop.f32.mrf.mxu0
  %v149 = vadd.f32 0.0, %v148
  %150 = vmatmul.f32.gmra.mxu0 %v83
  %v151 = vpop.f32.mrf.mxu0
  %v152 = vadd.f32 0.0, %v151
  %153 = vmatmul.f32.gmra.mxu0 %v86
  %v154 = vpop.f32.mrf.mxu0
  %v155 = vadd.f32 0.0, %v154
  %156 = vmatmul.f32.gmra.mxu0 %v89
  %v157 = vpop.f32.mrf.mxu0
  %v158 = vadd.f32 0.0, %v157
  %159 = vmatmul.f32.gmra.mxu0 %v92
  %v160 = vpop.f32.mrf.mxu0
  %v161 = vadd.f32 0.0, %v160
  %162 = vmatmul.f32.gmra.mxu0 %v95
  %v163 = vpop.f32.mrf.mxu0
  %v164 = vadd.f32 0.0, %v163
  %165 = vmatmul.f32.gmra.mxu0 %v98
  %v166 = vpop.f32.mrf.mxu0
  %v167 = vadd.f32 0.0, %v166
  %168 = vmatmul.f32.gmra.mxu0 %v101
  %v169 = vpop.f32.mrf.mxu0
  %v170 = vadd.f32 0.0, %v169
  %171 = vmatmul.f32.gmra.mxu0 %v104
  %v172 = vpop.f32.mrf.mxu0
  %v173 = vadd.f32 0.0, %v172
  %174 = vmatmul.f32.gmra.mxu0 %v107
  %v175 = vpop.f32.mrf.mxu0
  %v176 = vadd.f32 0.0, %v175
  %177 = vmatmul.f32.gmra.mxu0 %v110
  %v178 = vpop.f32.mrf.mxu0
  %v179 = vadd.f32 0.0, %v178
  %180 = vmatmul.f32.gmra.mxu0 %v113
  %v181 = vpop.f32.mrf.mxu0
  %v182 = vadd.f32 0.0, %v181
  %183 = vmatmul.f32.gmra.mxu0 %v116
  %v184 = vpop.f32.mrf.mxu0
  %v185 = vadd.f32 0.0, %v184
  %186 = vmatmul.f32.gmra.mxu0 %v119
  %v187 = vpop.f32.mrf.mxu0
  %v188 = vadd.f32 0.0, %v187
  %189 = vmatmul.f32.gmra.mxu0 %v122
  %v190 = vpop.f32.mrf.mxu0
  %v191 = vadd.f32 0.0, %v190
  %192 = vdwg.mxu0
  %vm193 = vcmask 97280
  %v195 = vsel %vm193, %v40, 0
  %v198 = vsel %vm193, %v41, 0
  %v201 = vsel %vm193, %v42, 0
  %v204 = vsel %vm193, %v43, 0
  %v207 = vsel %vm193, %v44, 0
  %v210 = vsel %vm193, %v45, 0
  %v213 = vsel %vm193, %v46, 0
  %v216 = vsel %vm193, %v47, 0
  %v219 = vsel %vm193, %v48, 0
  %v222 = vsel %vm193, %v49, 0
  %v225 = vsel %vm193, %v50, 0
  %v228 = vsel %vm193, %v51, 0
  %v231 = vsel %vm193, %v52, 0
  %v234 = vsel %vm193, %v53, 0
  %v237 = vsel %vm193, %v54, 0
  %v240 = vsel %vm193, %v55, 0
  %v243 = vsel %vm124, %v57, 0
  %245 = vmatpush.msra.mxu0 0.0
  %246 = vmatpush.msra.mxu0 0.0
  %247 = vmatpush.msra.mxu0 0.0
  %248 = vmatpush.msra.mxu0 0.0
  %249 = vmatpush.msra.mxu0 0.0
  %250 = vmatpush.msra.mxu0 0.0
  %251 = vmatpush.msra.mxu0 0.0
  %252 = vmatpush.msra.mxu0 0.0
  %253 = vmatpush.msra.mxu0 0.0
  %254 = vmatpush.msra.mxu0 0.0
  %255 = vmatpush.msra.mxu0 0.0
  %256 = vmatpush.msra.mxu0 0.0
  %257 = vmatpush.msra.mxu0 0.0
  %258 = vmatpush.msra.mxu0 0.0
  %259 = vmatpush.msra.mxu0 %v243
  %260 = vmatpush.msra.mxu0 %v56
  %261 = vmatmul.f32.gmra.mxu0 %v195
  %v262 = vpop.f32.mrf.mxu0
  %v263 = vadd.f32 %v146, %v262
  %264 = vmatmul.f32.gmra.mxu0 %v198
  %v265 = vpop.f32.mrf.mxu0
  %v266 = vadd.f32 %v149, %v265
  %267 = vmatmul.f32.gmra.mxu0 %v201
  %v268 = vpop.f32.mrf.mxu0
  %v269 = vadd.f32 %v152, %v268
  %270 = vmatmul.f32.gmra.mxu0 %v204
  %v271 = vpop.f32.mrf.mxu0
  %v272 = vadd.f32 %v155, %v271
  %273 = vmatmul.f32.gmra.mxu0 %v207
  %v274 = vpop.f32.mrf.mxu0
  %v275 = vadd.f32 %v158, %v274
  %276 = vmatmul.f32.gmra.mxu0 %v210
  %v277 = vpop.f32.mrf.mxu0
  %v278 = vadd.f32 %v161, %v277
  %279 = vmatmul.f32.gmra.mxu0 %v213
  %v280 = vpop.f32.mrf.mxu0
  %v281 = vadd.f32 %v164, %v280
  %282 = vmatmul.f32.gmra.mxu0 %v216
  %v283 = vpop.f32.mrf.mxu0
  %v284 = vadd.f32 %v167, %v283
  %285 = vmatmul.f32.gmra.mxu0 %v219
  %v286 = vpop.f32.mrf.mxu0
  %v287 = vadd.f32 %v170, %v286
  %288 = vmatmul.f32.gmra.mxu0 %v222
  %v289 = vpop.f32.mrf.mxu0
  %v290 = vadd.f32 %v173, %v289
  %291 = vmatmul.f32.gmra.mxu0 %v225
  %v292 = vpop.f32.mrf.mxu0
  %v293 = vadd.f32 %v176, %v292
  %294 = vmatmul.f32.gmra.mxu0 %v228
  %v295 = vpop.f32.mrf.mxu0
  %v296 = vadd.f32 %v179, %v295
  %297 = vmatmul.f32.gmra.mxu0 %v231
  %v298 = vpop.f32.mrf.mxu0
  %v299 = vadd.f32 %v182, %v298
  %300 = vmatmul.f32.gmra.mxu0 %v234
  %v301 = vpop.f32.mrf.mxu0
  %v302 = vadd.f32 %v185, %v301
  %303 = vmatmul.f32.gmra.mxu0 %v237
  %v304 = vpop.f32.mrf.mxu0
  %v305 = vadd.f32 %v188, %v304
  %306 = vmatmul.f32.gmra.mxu0 %v240
  %v307 = vpop.f32.mrf.mxu0
  %v308 = vadd.f32 %v191, %v307
  %309 = vdwg.mxu0
  %v310 = vld [vmem:[%s4] sm:$0x1]
  %v312 = vperm.slane %v310, 0
  %v314 = vadd.f32 %v263, %v312
  %v315 = vadd.f32 %v266, %v312
  %v316 = vadd.f32 %v269, %v312
  %v317 = vadd.f32 %v272, %v312
  %v318 = vadd.f32 %v275, %v312
  %v319 = vadd.f32 %v278, %v312
  %v320 = vadd.f32 %v281, %v312
  %v321 = vadd.f32 %v284, %v312
  %v322 = vadd.f32 %v287, %v312
  %v323 = vadd.f32 %v290, %v312
  %v324 = vadd.f32 %v293, %v312
  %v325 = vadd.f32 %v296, %v312
  %v326 = vadd.f32 %v299, %v312
  %v327 = vadd.f32 %v302, %v312
  %v328 = vadd.f32 %v305, %v312
  %v329 = vadd.f32 %v308, %v312
  %v330 = vmul.f32 %v314, 0.01
  %v331 = vmul.f32 %v315, 0.01
  %v332 = vmul.f32 %v316, 0.01
  %v333 = vmul.f32 %v317, 0.01
  %v334 = vmul.f32 %v318, 0.01
  %v335 = vmul.f32 %v319, 0.01
  %v336 = vmul.f32 %v320, 0.01
  %v337 = vmul.f32 %v321, 0.01
  %v338 = vmul.f32 %v322, 0.01
  %v339 = vmul.f32 %v323, 0.01
  %v340 = vmul.f32 %v324, 0.01
  %v341 = vmul.f32 %v325, 0.01
  %v342 = vmul.f32 %v326, 0.01
  %v343 = vmul.f32 %v327, 0.01
  %v344 = vmul.f32 %v328, 0.01
  %v345 = vmul.f32 %v329, 0.01
  %v346 = vmax.f32 %v314, %v330
  %v347 = vmax.f32 %v315, %v331
  %v348 = vmax.f32 %v316, %v332
  %v349 = vmax.f32 %v317, %v333
  %v350 = vmax.f32 %v318, %v334
  %v351 = vmax.f32 %v319, %v335
  %v352 = vmax.f32 %v320, %v336
  %v353 = vmax.f32 %v321, %v337
  %v354 = vmax.f32 %v322, %v338
  %v355 = vmax.f32 %v323, %v339
  %v356 = vmax.f32 %v324, %v340
  %v357 = vmax.f32 %v325, %v341
  %v358 = vmax.f32 %v326, %v342
  %v359 = vmax.f32 %v327, %v343
  %v360 = vmax.f32 %v328, %v344
  %v361 = vmax.f32 %v329, %v345
  %v362 = vld [vmem:[%s5] sm:$0xff]
  %v363 = vld [vmem:[%s5 + $0x8] sm:$0xff]
  %v364 = vld [vmem:[%s5 + $0x10] sm:$0xff]
  %v365 = vld [vmem:[%s5 + $0x18] sm:$0xff]
  %v366 = vld [vmem:[%s5 + $0x20] sm:$0xff]
  %v367 = vld [vmem:[%s5 + $0x28] sm:$0xff]
  %v368 = vld [vmem:[%s5 + $0x30] sm:$0xff]
  %v369 = vld [vmem:[%s5 + $0x38] sm:$0xff]
  %v370 = vld [vmem:[%s6] sm:$0x1]
  %v372 = vperm.slane %v370, 0
  %vm374 = vcmask 523264
  %v376 = vsel %vm374, %v346, 0
  %v379 = vsel %vm374, %v347, 0
  %v382 = vsel %vm374, %v348, 0
  %v385 = vsel %vm374, %v349, 0
  %v388 = vsel %vm374, %v350, 0
  %v391 = vsel %vm374, %v351, 0
  %v394 = vsel %vm374, %v352, 0
  %v397 = vsel %vm374, %v353, 0
  %v400 = vsel %vm374, %v354, 0
  %v403 = vsel %vm374, %v355, 0
  %v406 = vsel %vm374, %v356, 0
  %v409 = vsel %vm374, %v357, 0
  %v412 = vsel %vm374, %v358, 0
  %v415 = vsel %vm374, %v359, 0
  %v418 = vsel %vm374, %v360, 0
  %v421 = vsel %vm374, %v361, 0
  %423 = vmatpush.msra.mxu0 0.0
  %424 = vmatpush.msra.mxu0 0.0
  %425 = vmatpush.msra.mxu0 0.0
  %426 = vmatpush.msra.mxu0 0.0
  %427 = vmatpush.msra.mxu0 0.0
  %428 = vmatpush.msra.mxu0 0.0
  %429 = vmatpush.msra.mxu0 0.0
  %430 = vmatpush.msra.mxu0 0.0
  %431 = vmatpush.msra.mxu0 %v369
  %432 = vmatpush.msra.mxu0 %v368
  %433 = vmatpush.msra.mxu0 %v367
  %434 = vmatpush.msra.mxu0 %v366
  %435 = vmatpush.msra.mxu0 %v365
  %436 = vmatpush.msra.mxu0 %v364
  %437 = vmatpush.msra.mxu0 %v363
  %438 = vmatpush.msra.mxu0 %v362
  %439 = vmatmul.f32.gmra.mxu0 %v376
  %v440 = vpop.f32.mrf.mxu0
  %v441 = vadd.f32 %v372, %v440
  %442 = vmatmul.f32.gmra.mxu0 %v379
  %v443 = vpop.f32.mrf.mxu0
  %v444 = vadd.f32 %v372, %v443
  %445 = vmatmul.f32.gmra.mxu0 %v382
  %v446 = vpop.f32.mrf.mxu0
  %v447 = vadd.f32 %v372, %v446
  %448 = vmatmul.f32.gmra.mxu0 %v385
  %v449 = vpop.f32.mrf.mxu0
  %v450 = vadd.f32 %v372, %v449
  %451 = vmatmul.f32.gmra.mxu0 %v388
  %v452 = vpop.f32.mrf.mxu0
  %v453 = vadd.f32 %v372, %v452
  %454 = vmatmul.f32.gmra.mxu0 %v391
  %v455 = vpop.f32.mrf.mxu0
  %v456 = vadd.f32 %v372, %v455
  %457 = vmatmul.f32.gmra.mxu0 %v394
  %v458 = vpop.f32.mrf.mxu0
  %v459 = vadd.f32 %v372, %v458
  %460 = vmatmul.f32.gmra.mxu0 %v397
  %v461 = vpop.f32.mrf.mxu0
  %v462 = vadd.f32 %v372, %v461
  %463 = vmatmul.f32.gmra.mxu0 %v400
  %v464 = vpop.f32.mrf.mxu0
  %v465 = vadd.f32 %v372, %v464
  %466 = vmatmul.f32.gmra.mxu0 %v403
  %v467 = vpop.f32.mrf.mxu0
  %v468 = vadd.f32 %v372, %v467
  %469 = vmatmul.f32.gmra.mxu0 %v406
  %v470 = vpop.f32.mrf.mxu0
  %v471 = vadd.f32 %v372, %v470
  %472 = vmatmul.f32.gmra.mxu0 %v409
  %v473 = vpop.f32.mrf.mxu0
  %v474 = vadd.f32 %v372, %v473
  %475 = vmatmul.f32.gmra.mxu0 %v412
  %v476 = vpop.f32.mrf.mxu0
  %v477 = vadd.f32 %v372, %v476
  %478 = vmatmul.f32.gmra.mxu0 %v415
  %v479 = vpop.f32.mrf.mxu0
  %v480 = vadd.f32 %v372, %v479
  %481 = vmatmul.f32.gmra.mxu0 %v418
  %v482 = vpop.f32.mrf.mxu0
  %v483 = vadd.f32 %v372, %v482
  %484 = vmatmul.f32.gmra.mxu0 %v421
  %v485 = vpop.f32.mrf.mxu0
  %v486 = vadd.f32 %v372, %v485
  %487 = vdwg.mxu0
  %v488 = vmul.f32 %v441, 0.01
  %v489 = vmul.f32 %v444, 0.01
  %v490 = vmul.f32 %v447, 0.01
  %v491 = vmul.f32 %v450, 0.01
  %v492 = vmul.f32 %v453, 0.01
  %v493 = vmul.f32 %v456, 0.01
  %v494 = vmul.f32 %v459, 0.01
  %v495 = vmul.f32 %v462, 0.01
  %v496 = vmul.f32 %v465, 0.01
  %v497 = vmul.f32 %v468, 0.01
  %v498 = vmul.f32 %v471, 0.01
  %v499 = vmul.f32 %v474, 0.01
  %v500 = vmul.f32 %v477, 0.01
  %v501 = vmul.f32 %v480, 0.01
  %v502 = vmul.f32 %v483, 0.01
  %v503 = vmul.f32 %v486, 0.01
  %v504 = vmax.f32 %v441, %v488
  %v505 = vmax.f32 %v444, %v489
  %v506 = vmax.f32 %v447, %v490
  %v507 = vmax.f32 %v450, %v491
  %v508 = vmax.f32 %v453, %v492
  %v509 = vmax.f32 %v456, %v493
  %v510 = vmax.f32 %v459, %v494
  %v511 = vmax.f32 %v462, %v495
  %v512 = vmax.f32 %v465, %v496
  %v513 = vmax.f32 %v468, %v497
  %v514 = vmax.f32 %v471, %v498
  %v515 = vmax.f32 %v474, %v499
  %v516 = vmax.f32 %v477, %v500
  %v517 = vmax.f32 %v480, %v501
  %v518 = vmax.f32 %v483, %v502
  %v519 = vmax.f32 %v486, %v503
  %v520 = vld [vmem:[%s7] sm:$0xff]
  %v521 = vld [vmem:[%s7 + $0x8] sm:$0xff]
  %v522 = vld [vmem:[%s7 + $0x10] sm:$0xff]
  %v523 = vld [vmem:[%s7 + $0x18] sm:$0xff]
  %v524 = vld [vmem:[%s8] sm:$0x1]
  %v526 = vperm.slane %v524, 0
  %vm528 = vcmask 261120
  %v530 = vsel %vm528, %v504, 0
  %v533 = vsel %vm528, %v505, 0
  %v536 = vsel %vm528, %v506, 0
  %v539 = vsel %vm528, %v507, 0
  %v542 = vsel %vm528, %v508, 0
  %v545 = vsel %vm528, %v509, 0
  %v548 = vsel %vm528, %v510, 0
  %v551 = vsel %vm528, %v511, 0
  %v554 = vsel %vm528, %v512, 0
  %v557 = vsel %vm528, %v513, 0
  %v560 = vsel %vm528, %v514, 0
  %v563 = vsel %vm528, %v515, 0
  %v566 = vsel %vm528, %v516, 0
  %v569 = vsel %vm528, %v517, 0
  %v572 = vsel %vm528, %v518, 0
  %v575 = vsel %vm528, %v519, 0
  %577 = vmatpush.msra.mxu0 0.0
  %578 = vmatpush.msra.mxu0 0.0
  %579 = vmatpush.msra.mxu0 0.0
  %580 = vmatpush.msra.mxu0 0.0
  %581 = vmatpush.msra.mxu0 0.0
  %582 = vmatpush.msra.mxu0 0.0
  %583 = vmatpush.msra.mxu0 0.0
  %584 = vmatpush.msra.mxu0 0.0
  %585 = vmatpush.msra.mxu0 0.0
  %586 = vmatpush.msra.mxu0 0.0
  %587 = vmatpush.msra.mxu0 0.0
  %588 = vmatpush.msra.mxu0 0.0
  %589 = vmatpush.msra.mxu0 %v523
  %590 = vmatpush.msra.mxu0 %v522
  %591 = vmatpush.msra.mxu0 %v521
  %592 = vmatpush.msra.mxu0 %v520
  %593 = vmatmul.f32.gmra.mxu0 %v530
  %v594 = vpop.f32.mrf.mxu0
  %v595 = vadd.f32 %v526, %v594
  %596 = vmatmul.f32.gmra.mxu0 %v533
  %v597 = vpop.f32.mrf.mxu0
  %v598 = vadd.f32 %v526, %v597
  %599 = vmatmul.f32.gmra.mxu0 %v536
  %v600 = vpop.f32.mrf.mxu0
  %v601 = vadd.f32 %v526, %v600
  %602 = vmatmul.f32.gmra.mxu0 %v539
  %v603 = vpop.f32.mrf.mxu0
  %v604 = vadd.f32 %v526, %v603
  %605 = vmatmul.f32.gmra.mxu0 %v542
  %v606 = vpop.f32.mrf.mxu0
  %v607 = vadd.f32 %v526, %v606
  %608 = vmatmul.f32.gmra.mxu0 %v545
  %v609 = vpop.f32.mrf.mxu0
  %v610 = vadd.f32 %v526, %v609
  %611 = vmatmul.f32.gmra.mxu0 %v548
  %v612 = vpop.f32.mrf.mxu0
  %v613 = vadd.f32 %v526, %v612
  %614 = vmatmul.f32.gmra.mxu0 %v551
  %v615 = vpop.f32.mrf.mxu0
  %v616 = vadd.f32 %v526, %v615
  %617 = vmatmul.f32.gmra.mxu0 %v554
  %v618 = vpop.f32.mrf.mxu0
  %v619 = vadd.f32 %v526, %v618
  %620 = vmatmul.f32.gmra.mxu0 %v557
  %v621 = vpop.f32.mrf.mxu0
  %v622 = vadd.f32 %v526, %v621
  %623 = vmatmul.f32.gmra.mxu0 %v560
  %v624 = vpop.f32.mrf.mxu0
  %v625 = vadd.f32 %v526, %v624
  %626 = vmatmul.f32.gmra.mxu0 %v563
  %v627 = vpop.f32.mrf.mxu0
  %v628 = vadd.f32 %v526, %v627
  %629 = vmatmul.f32.gmra.mxu0 %v566
  %v630 = vpop.f32.mrf.mxu0
  %v631 = vadd.f32 %v526, %v630
  %632 = vmatmul.f32.gmra.mxu0 %v569
  %v633 = vpop.f32.mrf.mxu0
  %v634 = vadd.f32 %v526, %v633
  %635 = vmatmul.f32.gmra.mxu0 %v572
  %v636 = vpop.f32.mrf.mxu0
  %v637 = vadd.f32 %v526, %v636
  %638 = vmatmul.f32.gmra.mxu0 %v575
  %v639 = vpop.f32.mrf.mxu0
  %v640 = vadd.f32 %v526, %v639
  %641 = vdwg.mxu0
  %v642 = vmul.f32 %v595, 0.01
  %v643 = vmul.f32 %v598, 0.01
  %v644 = vmul.f32 %v601, 0.01
  %v645 = vmul.f32 %v604, 0.01
  %v646 = vmul.f32 %v607, 0.01
  %v647 = vmul.f32 %v610, 0.01
  %v648 = vmul.f32 %v613, 0.01
  %v649 = vmul.f32 %v616, 0.01
  %v650 = vmul.f32 %v619, 0.01
  %v651 = vmul.f32 %v622, 0.01
  %v652 = vmul.f32 %v625, 0.01
  %v653 = vmul.f32 %v628, 0.01
  %v654 = vmul.f32 %v631, 0.01
  %v655 = vmul.f32 %v634, 0.01
  %v656 = vmul.f32 %v637, 0.01
  %v657 = vmul.f32 %v640, 0.01
  %v658 = vmax.f32 %v595, %v642
  %v659 = vmax.f32 %v598, %v643
  %v660 = vmax.f32 %v601, %v644
  %v661 = vmax.f32 %v604, %v645
  %v662 = vmax.f32 %v607, %v646
  %v663 = vmax.f32 %v610, %v647
  %v664 = vmax.f32 %v613, %v648
  %v665 = vmax.f32 %v616, %v649
  %v666 = vmax.f32 %v619, %v650
  %v667 = vmax.f32 %v622, %v651
  %v668 = vmax.f32 %v625, %v652
  %v669 = vmax.f32 %v628, %v653
  %v670 = vmax.f32 %v631, %v654
  %v671 = vmax.f32 %v634, %v655
  %v672 = vmax.f32 %v637, %v656
  %v673 = vmax.f32 %v640, %v657
  %v674 = vld [vmem:[%s9] sm:$0x1]
  %v675 = vld [vmem:[#allocation2] sm:$0x1]
  %677 = vset.pattern.permute.xlu0 0
  %678 = vperm.xlu0 %677, %v675
  %v679 = vpop.permute.xlu0 %678
  %v681 = vperm.slane %v679, 0
  %v683 = vsel %vm528, %v674, 0
  %v686 = vsel %vm528, %v658, 0
  %v689 = vsel %vm528, %v659, 0
  %v692 = vsel %vm528, %v660, 0
  %v695 = vsel %vm528, %v661, 0
  %v698 = vsel %vm528, %v662, 0
  %v701 = vsel %vm528, %v663, 0
  %v704 = vsel %vm528, %v664, 0
  %v707 = vsel %vm528, %v665, 0
  %v710 = vsel %vm528, %v666, 0
  %v713 = vsel %vm528, %v667, 0
  %v716 = vsel %vm528, %v668, 0
  %v719 = vsel %vm528, %v669, 0
  %v722 = vsel %vm528, %v670, 0
  %v725 = vsel %vm528, %v671, 0
  %v728 = vsel %vm528, %v672, 0
  %v731 = vsel %vm528, %v673, 0
  %733 = vmatpush.xpose.msra.mxu0 %v731
  %734 = vmatpush.xpose.msra.mxu0 %v728
  %735 = vmatpush.xpose.msra.mxu0 %v725
  %736 = vmatpush.xpose.msra.mxu0 %v722
  %737 = vmatpush.xpose.msra.mxu0 %v719
  %738 = vmatpush.xpose.msra.mxu0 %v716
  %739 = vmatpush.xpose.msra.mxu0 %v713
  %740 = vmatpush.xpose.msra.mxu0 %v710
  %741 = vmatpush.xpose.msra.mxu0 %v707
  %742 = vmatpush.xpose.msra.mxu0 %v704
  %743 = vmatpush.xpose.msra.mxu0 %v701
  %744 = vmatpush.xpose.msra.mxu0 %v698
  %745 = vmatpush.xpose.msra.mxu0 %v695
  %746 = vmatpush.xpose.msra.mxu0 %v692
  %747 = vmatpush.xpose.msra.mxu0 %v689
  %748 = vmatpush.xpose.msra.mxu0 %v686
  %749 = vmatmul.f32.gmra.mxu0 %v683
  %v750 = vpop.f32.mrf.mxu0
  %v751 = vadd.f32 %v681, %v750
  %752 = vdwg.mxu0
  %753 = vst [vmem:[%s11] sm:$0x1] %v751
  // Predicated region
  $region46: #{cnet_forward.1} parent=0 // pred_check
    _
  $region47: #{cnet_forward.1} parent=0 // pred_check_branch
    %755 = sbr.rel (0) target = $region49
  $region48: #{cnet_forward.1} parent=0 // pred_region
    _
  $region49: #{cnet_forward.1} parent=0 // pred_fallthru
    _
  // Predicated region
  $region50: #{cnet_forward.1} parent=0 // pred_check
    _
  $region51: #{cnet_forward.1} parent=0 // pred_check_branch
    %757 = sbr.rel (0) target = $region53
  $region52: #{cnet_forward.1} parent=0 // pred_region
    _
  $region53: #{cnet_forward.1} parent=0 // pred_fallthru
    _

</llo_original>
